<compile_context>
chip_gen: v7x
topology: tpu7x:2x2x1
jax: 0.10.0
libtpu: 0.0.40
codegen_flags: <defaults>
</compile_context>

<pallas_src>
import jax
import jax.numpy as jnp
from jax.experimental import pallas as pl
from jax.experimental.pallas import tpu as pltpu

LN_EPS = 1e-5


def _patch_merging_kernel(x_ref, w_ref, b_ref, o_ref):
    # x_ref: (8C, TM)   w_ref: (2C, 8C)   b_ref: (2C, 1)   o_ref: (2C, TM)
    x = x_ref[...].astype(jnp.float32)
    mean = jnp.mean(x, axis=0, keepdims=True)                 # (1, TM)
    centered = x - mean
    var = jnp.mean(centered * centered, axis=0, keepdims=True)
    xn = centered * jax.lax.rsqrt(var + LN_EPS)               # (8C, TM)
    y = jnp.dot(w_ref[...].astype(jnp.float32), xn,
                preferred_element_type=jnp.float32)           # (2C, TM)
    y = y + b_ref[...].astype(jnp.float32)                    # bias over lanes
    o_ref[...] = y.astype(o_ref.dtype)


def _choose_token_tile(t, cap=512):
    """Pick a token-tile size.

    Returns (tile, padded_t).  tile is either the full per-batch token count
    (when it fits the cap) or a multiple of 128, so BlockSpec lane/sublane
    constraints are always met.  padded_t == t on the common path (no jnp.pad).
    """
    if t <= cap:
        return t, t
    for tile in (512, 384, 256, 128):
        if tile <= cap and t % tile == 0:
            return tile, t
    tile = max(128, (min(cap, 512) // 128) * 128)
    padded = ((t + tile - 1) // tile) * tile
    return tile, padded


def _fused_norm_reduction(x_t, w_prime, bias2d, *, tile_cap=512):
    """x_t: (B, 8C, T)  ->  (B, 2C, T)  via LayerNorm-over-features + matmul."""
    b, k8c, t = x_t.shape
    c2 = w_prime.shape[0]
    tile_m, t_pad = _choose_token_tile(t, tile_cap)
    if t_pad != t:
        # Padded token columns are all-zero -> x_hat = 0, y = bias (finite),
        # sliced off below.
        x_t = jnp.pad(x_t, ((0, 0), (0, 0), (0, t_pad - t)))

    out = pl.pallas_call(
        _patch_merging_kernel,
        out_shape=jax.ShapeDtypeStruct((b, c2, t_pad), x_t.dtype),
        grid_spec=pltpu.PrefetchScalarGridSpec(
            num_scalar_prefetch=0,
            grid=(b, t_pad // tile_m),
            in_specs=[
                pl.BlockSpec((None, k8c, tile_m), lambda bi, ti: (bi, 0, ti)),
                pl.BlockSpec((c2, k8c), lambda bi, ti: (0, 0)),
                pl.BlockSpec((c2, 1), lambda bi, ti: (0, 0)),
            ],
            out_specs=pl.BlockSpec((None, c2, tile_m),
                                   lambda bi, ti: (bi, 0, ti)),
        ),
        compiler_params=pltpu.CompilerParams(
            dimension_semantics=("parallel", "parallel"),
            vmem_limit_bytes=32 * 1024 * 1024,
        ),
    )(x_t, w_prime, bias2d)

    if t_pad != t:
        out = out[:, :, :t]
    return out


def patch_merging_forward(x, gamma, beta, reduction_weight):
    """Forward pass matching PyTorch PatchMerging (spatial_dims=3).

    x: (B, C, D, H, W) float32.
    gamma, beta: (8*C,)  LayerNorm affine params.
    reduction_weight: (2*C, 8*C)  nn.Linear weight (out, in), no bias.
    Returns: (B, 2*C, D'//2, H'//2, W'//2) with D', H', W' even-padded dims.
    """
    B, C, D, H, W = x.shape
    pd, ph, pw = D % 2, H % 2, W % 2
    if pd or ph or pw:
        x = jnp.pad(x, ((0, 0), (0, 0), (0, pd), (0, ph), (0, pw)))
        B, C, D, H, W = x.shape
    D2, H2, W2 = D // 2, H // 2, W // 2
    T = D2 * H2 * W2
    C8, C2 = 8 * C, 2 * C

    # Feature-major activation: feature order (c, d_off, h_off, w_off),
    # token order (d2, h2, w2).  Single XLA transpose, no output-side permute.
    xr = x.reshape(B, C, D2, 2, H2, 2, W2, 2)
    xr = jnp.transpose(xr, (0, 1, 3, 5, 7, 2, 4, 6))   # (B, C, 2,2,2, D2,H2,W2)
    x_t = xr.reshape(B, C8, T)

    # Permute weight / LN params from the torch feature order
    # (d_off, h_off, w_off, c) to (c, d_off, h_off, w_off), then fold the
    # LayerNorm affine into the weight and a bias vector.
    w_perm = reduction_weight.reshape(C2, 2, 2, 2, C)
    w_perm = jnp.transpose(w_perm, (0, 4, 1, 2, 3)).reshape(C2, C8)
    g_perm = jnp.transpose(gamma.reshape(2, 2, 2, C), (3, 0, 1, 2)).reshape(C8)
    b_perm = jnp.transpose(beta.reshape(2, 2, 2, C), (3, 0, 1, 2)).reshape(C8)
    w_prime = (w_perm * g_perm[None, :]).astype(x.dtype)      # (2C, 8C)
    bias2d = (w_perm @ b_perm).reshape(C2, 1).astype(jnp.float32)

    y = _fused_norm_reduction(x_t, w_prime, bias2d)           # (B, 2C, T)
    return y.reshape(B, C2, D2, H2, W2)


def reference_forward(x, gamma, beta, reduction_weight):
    """Pure-JAX reference mirroring the PyTorch module."""
    B, C, D, H, W = x.shape
    pd, ph, pw = D % 2, H % 2, W % 2
    if pd or ph or pw:
        x = jnp.pad(x, ((0, 0), (0, 0), (0, pd), (0, ph), (0, pw)))
        B, C, D, H, W = x.shape
    D2, H2, W2 = D // 2, H // 2, W // 2
    xr = x.reshape(B, C, D2, 2, H2, 2, W2, 2)
    xr = jnp.transpose(xr, (0, 2, 4, 6, 3, 5, 7, 1)).reshape(B, D2, H2, W2, 8 * C)
    mean = jnp.mean(xr, axis=-1, keepdims=True)
    var = jnp.mean((xr - mean) ** 2, axis=-1, keepdims=True)
    xn = (xr - mean) / jnp.sqrt(var + LN_EPS) * gamma + beta
    y = jnp.einsum("bdhwk,ok->bdhwo", xn, reduction_weight)
    return jnp.transpose(y, (0, 4, 1, 2, 3))


if __name__ == "__main__":
    key = jax.random.PRNGKey(0)
    k_x, k_w, k_g, k_b = jax.random.split(key, 4)

    B, C, D, H, W = 2, 4, 8, 8, 8   # small 3D volume
    dim = C
    factor = 8  # 2 ** spatial_dims

    x = jax.random.normal(k_x, (B, C, D, H, W), dtype=jnp.float32)
    # nn.Linear(factor*dim, 2*dim, bias=False): weight shape (2*dim, factor*dim)
    reduction_weight = jax.random.normal(
        k_w, (2 * dim, factor * dim), dtype=jnp.float32) * 0.1
    # LayerNorm(factor*dim): perturb gamma/beta so the affine path is exercised.
    gamma = 1.0 + 0.01 * jax.random.normal(k_g, (factor * dim,), dtype=jnp.float32)
    beta = 0.01 * jax.random.normal(k_b, (factor * dim,), dtype=jnp.float32)

    fwd = jax.jit(patch_merging_forward)
    out = jax.block_until_ready(fwd(x, gamma, beta, reduction_weight))

    ref = reference_forward(x, gamma, beta, reduction_weight)
    assert out.shape == (B, 2 * dim, D // 2, H // 2, W // 2), out.shape
    assert jnp.allclose(out, ref, atol=1e-4, rtol=1e-4), float(
        jnp.max(jnp.abs(out - ref)))

    print("KERNEL_OK")
</pallas_src>

<mosaic_0001>
module attributes {stable_mosaic.version = 11 : i64} {
  func.func @_patch_merging_kernel(%arg0: i32, %arg1: i32, %arg2: memref<1x32x64xf32, #tpu.memory_space<vmem>>, %arg3: memref<8x32xf32, #tpu.memory_space<vmem>>, %arg4: memref<8x1xf32, #tpu.memory_space<vmem>>, %arg5: memref<1x8x64xf32, #tpu.memory_space<vmem>>) attributes {dimension_semantics = [#tpu.dimension_semantics<parallel>, #tpu.dimension_semantics<parallel>], iteration_bounds = array<i64: 2, 1>, scalar_prefetch = 0 : i64, scratch_operands = 0 : i64, tpu.core_type = #tpu.core_type<tc>, window_params = [{transform_indices = @transform_0, window_bounds = array<i64: 1, 32, 64>}, {pipeline_mode = #tpu.pipeline_mode<synchronous>, transform_indices = @transform_1, window_bounds = array<i64: 8, 32>}, {pipeline_mode = #tpu.pipeline_mode<synchronous>, transform_indices = @transform_2, window_bounds = array<i64: 8, 1>}, {transform_indices = @transform_3, window_bounds = array<i64: 1, 8, 64>}]} {
    %c0 = arith.constant 0 : index
    %c0_0 = arith.constant 0 : index
    %c0_1 = arith.constant 0 : index
    %0 = vector.load %arg2[%c0, %c0_0, %c0_1] : memref<1x32x64xf32, #tpu.memory_space<vmem>>, vector<1x32x64xf32>
    %1 = vector.shape_cast %0 : vector<1x32x64xf32> to vector<32x64xf32>
    %cst = arith.constant dense<0.000000e+00> : vector<64xf32>
    %2 = vector.multi_reduction <add>, %1, %cst [0] : vector<32x64xf32> to vector<64xf32>
    %3 = vector.shape_cast %2 : vector<64xf32> to vector<1x64xf32>
    %cst_2 = arith.constant 3.200000e+01 : f32
    %4 = vector.broadcast %cst_2 : f32 to vector<1x64xf32>
    %5 = arith.divf %3, %4 : vector<1x64xf32>
    %6 = vector.broadcast %5 : vector<1x64xf32> to vector<32x64xf32>
    %7 = arith.subf %1, %6 : vector<32x64xf32>
    %8 = arith.mulf %7, %7 : vector<32x64xf32>
    %cst_3 = arith.constant dense<0.000000e+00> : vector<64xf32>
    %9 = vector.multi_reduction <add>, %8, %cst_3 [0] : vector<32x64xf32> to vector<64xf32>
    %10 = vector.shape_cast %9 : vector<64xf32> to vector<1x64xf32>
    %cst_4 = arith.constant 3.200000e+01 : f32
    %11 = vector.broadcast %cst_4 : f32 to vector<1x64xf32>
    %12 = arith.divf %10, %11 : vector<1x64xf32>
    %cst_5 = arith.constant 9.99999974E-6 : f32
    %13 = vector.broadcast %cst_5 : f32 to vector<1x64xf32>
    %14 = arith.addf %12, %13 : vector<1x64xf32>
    %15 = math.rsqrt %14 : vector<1x64xf32>
    %16 = vector.broadcast %15 : vector<1x64xf32> to vector<32x64xf32>
    %17 = arith.mulf %7, %16 : vector<32x64xf32>
    %c0_6 = arith.constant 0 : index
    %c0_7 = arith.constant 0 : index
    %18 = vector.load %arg3[%c0_6, %c0_7] : memref<8x32xf32, #tpu.memory_space<vmem>>, vector<8x32xf32>
    %cst_8 = arith.constant dense<0.000000e+00> : vector<8x64xf32>
    %19 = tpu.matmul %18, %17, %cst_8 {dimension_numbers = #tpu.dot_dimension_numbers<[1], [0], [0], [1], [0, 0, 1, 1], [], []>} : vector<8x32xf32>, vector<32x64xf32>, vector<8x64xf32> -> vector<8x64xf32>
    %c0_9 = arith.constant 0 : index
    %c0_10 = arith.constant 0 : index
    %20 = vector.load %arg4[%c0_9, %c0_10] : memref<8x1xf32, #tpu.memory_space<vmem>>, vector<8x1xf32>
    %21 = vector.broadcast %20 : vector<8x1xf32> to vector<8x64xf32>
    %22 = arith.addf %19, %21 : vector<8x64xf32>
    %c0_11 = arith.constant 0 : index
    %c0_12 = arith.constant 0 : index
    %c0_13 = arith.constant 0 : index
    %23 = vector.load %arg5[%c0_11, %c0_12, %c0_13] : memref<1x8x64xf32, #tpu.memory_space<vmem>>, vector<1x8x64xf32>
    %24 = vector.shape_cast %23 : vector<1x8x64xf32> to vector<8x64xf32>
    %25 = vector.shape_cast %22 : vector<8x64xf32> to vector<1x8x64xf32>
    tpu.vector_store %arg5[%c0_11, %c0_12, %c0_13], %25 {strides = array<i32>} : memref<1x8x64xf32, #tpu.memory_space<vmem>>, vector<1x8x64xf32>,
    return
  }
  func.func @transform_0(%arg0: i32, %arg1: i32) -> (i32, i32, i32) {
    %c0_i32 = arith.constant 0 : i32
    %c0_i32_0 = arith.constant 0 : i32
    return %arg0, %c0_i32, %arg1 : i32, i32, i32
  }
  func.func @transform_1(%arg0: i32, %arg1: i32) -> (i32, i32) {
    %c0_i32 = arith.constant 0 : i32
    %c0_i32_0 = arith.constant 0 : i32
    %c0_i32_1 = arith.constant 0 : i32
    return %c0_i32, %c0_i32_0 : i32, i32
  }
  func.func @transform_2(%arg0: i32, %arg1: i32) -> (i32, i32) {
    %c0_i32 = arith.constant 0 : i32
    %c0_i32_0 = arith.constant 0 : i32
    %c0_i32_1 = arith.constant 0 : i32
    return %c0_i32, %c0_i32_0 : i32, i32
  }
  func.func @transform_3(%arg0: i32, %arg1: i32) -> (i32, i32, i32) {
    %c0_i32 = arith.constant 0 : i32
    %c0_i32_0 = arith.constant 0 : i32
    return %arg0, %c0_i32, %arg1 : i32, i32, i32
  }
}

</mosaic_0001>

<llo_original>
// kernel: mul.5
$region0: #{mul.5}
  %s0 = inlined_call_operand.vmem [shape: f32[4,2,2,2], index: 0, kind: input, shape index: {}]
  %s1 = inlined_call_operand.vmem [shape: f32[32], index: 1, kind: output, shape index: {}]
  $region1: #{mul.5} parent=0
    #allocation0 [shape = 'u8[4096]{0}', space=vmem, size = 0x1000, scoped, tag = 'scoped mem for output reshape']
    #allocation1 [shape = 'u8[32768]{0}', space=vmem, size = 0x8000, scoped, tag = 'scoped mem for input reshape']
    %s3 = sshllo.u32 0, 2
    %s4 = smul.addr 2, 7
    %s5 = scalar_lea.vmem %s0, %s4
    %v6 = vld [vmem:[%s5] sm:%s3]
    %s7 = scalar_lea.vmem [#allocation1], 56
    %8 = vst [vmem:[%s7] sm:%s3] %v6
    %s9 = smul.addr 2, 6
    %s10 = scalar_lea.vmem %s0, %s9
    %v11 = vld [vmem:[%s10] sm:%s3]
    %s12 = scalar_lea.vmem [#allocation1], 48
    %13 = vst [vmem:[%s12] sm:%s3] %v11
    %s14 = smul.addr 2, 5
    %s15 = scalar_lea.vmem %s0, %s14
    %v16 = vld [vmem:[%s15] sm:%s3]
    %s17 = scalar_lea.vmem [#allocation1], 40
    %18 = vst [vmem:[%s17] sm:%s3] %v16
    %s19 = smul.addr 2, 4
    %s20 = scalar_lea.vmem %s0, %s19
    %v21 = vld [vmem:[%s20] sm:%s3]
    %s22 = scalar_lea.vmem [#allocation1], 32
    %23 = vst [vmem:[%s22] sm:%s3] %v21
    %s24 = smul.addr 2, 3
    %s25 = scalar_lea.vmem %s0, %s24
    %v26 = vld [vmem:[%s25] sm:%s3]
    %s27 = scalar_lea.vmem [#allocation1], 24
    %28 = vst [vmem:[%s27] sm:%s3] %v26
    %s29 = smul.addr 2, 2
    %s30 = scalar_lea.vmem %s0, %s29
    %v31 = vld [vmem:[%s30] sm:%s3]
    %s32 = scalar_lea.vmem [#allocation1], 16
    %33 = vst [vmem:[%s32] sm:%s3] %v31
    %s34 = scalar_lea.vmem %s0, 2
    %v35 = vld [vmem:[%s34] sm:%s3]
    %s36 = scalar_lea.vmem [#allocation1], 8
    %37 = vst [vmem:[%s36] sm:%s3] %v35
    %v38 = vld [vmem:[%s0] sm:%s3]
    %39 = vst [vmem:[#allocation1] sm:%s3] %v38
    %v40 = vld [vmem:[#allocation1] sm:$0x1]
    %vm41 = vcmask 15360
    %42 = vst.msk [vmem:[#allocation0] sm:$0x1] %vm41, %v40
    %s43 = scalar_lea.vmem [#allocation1], 57
    %v44 = vld [vmem:[%s43] sm:$0x1]
    %45 = vrot.lane.b32.xlu0 %v44, 30
    %v46 = vpop.permute.xlu0 %45
    %vm47 = vcmask 261360
    %48 = vst.msk [vmem:[#allocation0] sm:$0x1] %vm47, %v46
    %s49 = scalar_lea.vmem [#allocation1], 56
    %v50 = vld [vmem:[%s49] sm:$0x1]
    %51 = vrot.lane.b32.xlu0 %v50, 28
    %v52 = vpop.permute.xlu0 %51
    %vm53 = vcmask 244960
    %54 = vst.msk [vmem:[#allocation0] sm:$0x1] %vm53, %v52
    %s55 = scalar_lea.vmem [#allocation1], 49
    %v56 = vld [vmem:[%s55] sm:$0x1]
    %57 = vrot.lane.b32.xlu0 %v56, 26
    %v58 = vpop.permute.xlu0 %57
    %vm59 = vcmask 228560
    %60 = vst.msk [vmem:[#allocation0] sm:$0x1] %vm59, %v58
    %s61 = scalar_lea.vmem [#allocation1], 48
    %v62 = vld [vmem:[%s61] sm:$0x1]
    %63 = vrot.lane.b32.xlu0 %v62, 24
    %v64 = vpop.permute.xlu0 %63
    %vm65 = vcmask 212160
    %66 = vst.msk [vmem:[#allocation0] sm:$0x1] %vm65, %v64
    %s67 = scalar_lea.vmem [#allocation1], 41
    %v68 = vld [vmem:[%s67] sm:$0x1]
    %69 = vrot.lane.b32.xlu0 %v68, 22
    %v70 = vpop.permute.xlu0 %69
    %vm71 = vcmask 195760
    %72 = vst.msk [vmem:[#allocation0] sm:$0x1] %vm71, %v70
    %s73 = scalar_lea.vmem [#allocation1], 40
    %v74 = vld [vmem:[%s73] sm:$0x1]
    %75 = vrot.lane.b32.xlu0 %v74, 20
    %v76 = vpop.permute.xlu0 %75
    %vm77 = vcmask 179360
    %78 = vst.msk [vmem:[#allocation0] sm:$0x1] %vm77, %v76
    %s79 = scalar_lea.vmem [#allocation1], 33
    %v80 = vld [vmem:[%s79] sm:$0x1]
    %81 = vrot.lane.b32.xlu0 %v80, 18
    %v82 = vpop.permute.xlu0 %81
    %vm83 = vcmask 162960
    %84 = vst.msk [vmem:[#allocation0] sm:$0x1] %vm83, %v82
    %s85 = scalar_lea.vmem [#allocation1], 32
    %v86 = vld [vmem:[%s85] sm:$0x1]
    %87 = vrot.lane.b32.xlu0 %v86, 16
    %v88 = vpop.permute.xlu0 %87
    %vm89 = vcmask 146560
    %90 = vst.msk [vmem:[#allocation0] sm:$0x1] %vm89, %v88
    %s91 = scalar_lea.vmem [#allocation1], 25
    %v92 = vld [vmem:[%s91] sm:$0x1]
    %93 = vrot.lane.b32.xlu0 %v92, 14
    %v94 = vpop.permute.xlu0 %93
    %vm95 = vcmask 130160
    %96 = vst.msk [vmem:[#allocation0] sm:$0x1] %vm95, %v94
    %s97 = scalar_lea.vmem [#allocation1], 24
    %v98 = vld [vmem:[%s97] sm:$0x1]
    %99 = vrot.lane.b32.xlu0 %v98, 12
    %v100 = vpop.permute.xlu0 %99
    %vm101 = vcmask 113760
    %102 = vst.msk [vmem:[#allocation0] sm:$0x1] %vm101, %v100
    %s103 = scalar_lea.vmem [#allocation1], 17
    %v104 = vld [vmem:[%s103] sm:$0x1]
    %105 = vrot.lane.b32.xlu0 %v104, 10
    %v106 = vpop.permute.xlu0 %105
    %vm107 = vcmask 97360
    %108 = vst.msk [vmem:[#allocation0] sm:$0x1] %vm107, %v106
    %s109 = scalar_lea.vmem [#allocation1], 16
    %v110 = vld [vmem:[%s109] sm:$0x1]
    %111 = vrot.lane.b32.xlu0 %v110, 8
    %v112 = vpop.permute.xlu0 %111
    %vm113 = vcmask 80960
    %114 = vst.msk [vmem:[#allocation0] sm:$0x1] %vm113, %v112
    %s115 = scalar_lea.vmem [#allocation1], 9
    %v116 = vld [vmem:[%s115] sm:$0x1]
    %117 = vrot.lane.b32.xlu0 %v116, 6
    %v118 = vpop.permute.xlu0 %117
    %vm119 = vcmask 64560
    %120 = vst.msk [vmem:[#allocation0] sm:$0x1] %vm119, %v118
    %s121 = scalar_lea.vmem [#allocation1], 8
    %v122 = vld [vmem:[%s121] sm:$0x1]
    %123 = vrot.lane.b32.xlu0 %v122, 4
    %v124 = vpop.permute.xlu0 %123
    %vm125 = vcmask 48160
    %126 = vst.msk [vmem:[#allocation0] sm:$0x1] %vm125, %v124
    %s127 = scalar_lea.vmem [#allocation1], 1
    %v128 = vld [vmem:[%s127] sm:$0x1]
    %129 = vrot.lane.b32.xlu0 %v128, 2
    %v130 = vpop.permute.xlu0 %129
    %vm131 = vcmask 31760
    %132 = vst.msk [vmem:[#allocation0] sm:$0x1] %vm131, %v130
    %s134 = sshllo.u32 0, 1
    %v136 = vld [vmem:[#allocation0] sm:%s134]
    %s137 = sshllo.u32 0, 1
    %138 = vst [vmem:[%s1] sm:%s137] %v136

// kernel: patch_merging_forward.1
$region0: #{patch_merging_forward.1}
  #allocation0 [shape = 'u32[]', space=smem, size = 0x4, offset = 0x4, fixed_abs, tag = 'smem constant byte address 0x4 - core index']
  #allocation1 [shape = 'u32[144,128]{1,0:T(1,128)}', space=vmem, size = 0x12000, scoped, tag = 'internal scratch']
  %s0 = inlined_call_operand.vmem [shape: f32[2,32,64], index: 0, kind: input, shape index: {}]
  %s1 = inlined_call_operand.vmem [shape: f32[8,32], index: 1, kind: input, shape index: {}]
  %s2 = inlined_call_operand.vmem [shape: f32[8,1], index: 2, kind: input, shape index: {}]
  %s3 = inlined_call_operand.vmem [shape: f32[2,8,64], index: 3, kind: output, shape index: {}]
  %s4 = sld [smem:[#allocation0]]
  $region45: #{patch_merging_forward.1} parent=0
    _
  %s6 = ssub.s32 1, %s4
  %s7 = scalar_select 0, %s6, %s4
  loop: start=0, step=1, limit=4
  $region2: #{patch_merging_forward.1} parent=0 // loop_pre_header
    _
  $region3: #{patch_merging_forward.1} parent=0 // loop_header
    %s9 = sphi 0, %s13
    %p10 = scmp.ge.s32.totalorder %s9, 4
    %s16 = sphi 0, %s28
    %s17 = sphi 0, %s24
    %s18 = sphi 0, %s16
    %s19 = sphi 0, %s17
    %s20 = sphi 0, %s18
    %s21 = sphi 0, %s19
    %s33 = sphi 0, %s35
    %s36 = sphi 0, %s33
    %s37 = sphi 0, %s36
    %s53 = sphi 0, %s37
    %s57 = sphi 0, %s57
    %s59 = sphi 0, %s57
    %s60 = sphi 0, %s59
    %s74 = sphi 0, %s60
    %s78 = sphi 0, %s78
    %s80 = sphi 0, %s78
    %s81 = sphi 0, %s80
    %s95 = sphi 0, %s81
    %s103 = sphi 0, %s105
    %s106 = sphi 0, %s103
    %s107 = sphi 0, %s106
    %s123 = sphi 0, %s107
  $region4: #{patch_merging_forward.1} parent=0 // loop_header_branch
    %12 = sbr.rel (%p10) target = $region8
  $region5: #{patch_merging_forward.1} parent=0 // loop_body
    %s14 = ssub.s32 %s9, 1
    %s15 = ssub.s32 %s9, 2
    %s22 = sadd.s32 1, %s17
    %p23 = scmp.ge.s32.totalorder %s22, 1
    %s24 = scalar_select %p23, 0, %s22
    %s25 = sadd.s32 1, %s16
    %s26 = scalar_select %p23, %s25, %s16
    %p27 = scmp.ge.s32.totalorder %s26, 2
    %s28 = scalar_select %p27, 0, %s26
    %s29 = ssub.s32 %s16, %s28
    %s30 = ssub.s32 %s17, %s24
    %s31 = sor.u32 %s29, %s30
    %p32 = scmp.eq.s32.totalorder %s31, 0
    %s34 = sadd.s32 %s33, 1
    %s35 = scalar_select %p32, %s33, %s34
    %p38 = pneg %p32
    %p39 = scmp.eq.s32.totalorder %s9, 1
    %p40 = por %p38, %p39
    %p41 = scmp.ne.s32.totalorder %s33, %s36
    %p42 = scmp.eq.s32.totalorder %s9, 0
    %p43 = por %p41, %p42
    %p44 = scmp.ne.s32.totalorder %s33, %s36
    %p45 = scmp.eq.s32.totalorder %s14, 1
    %p46 = por %p44, %p45
    %p47 = scmp.ne.s32.totalorder %s36, %s37
    %p48 = scmp.eq.s32.totalorder %s14, 0
    %p49 = por %p47, %p48
    %p50 = scmp.ne.s32.totalorder %s36, %s37
    %p51 = scmp.eq.s32.totalorder %s15, 1
    %p52 = por %p50, %p51
    %p54 = scmp.ne.s32.totalorder %s37, %s53
    %p55 = scmp.eq.s32.totalorder %s15, 0
    %p56 = por %p54, %p55
    %s58 = sadd.s32 %s57, 1
    %p61 = scmp.eq.s32.totalorder %s9, 1
    %p62 = scmp.ne.s32.totalorder %s57, %s59
    %p63 = scmp.eq.s32.totalorder %s9, 0
    %p64 = por %p62, %p63
    %p65 = scmp.ne.s32.totalorder %s57, %s59
    %p66 = scmp.eq.s32.totalorder %s14, 1
    %p67 = por %p65, %p66
    %p68 = scmp.ne.s32.totalorder %s59, %s60
    %p69 = scmp.eq.s32.totalorder %s14, 0
    %p70 = por %p68, %p69
    %p71 = scmp.ne.s32.totalorder %s59, %s60
    %p72 = scmp.eq.s32.totalorder %s15, 1
    %p73 = por %p71, %p72
    %p75 = scmp.ne.s32.totalorder %s60, %s74
    %p76 = scmp.eq.s32.totalorder %s15, 0
    %p77 = por %p75, %p76
    %s79 = sadd.s32 %s78, 1
    %p82 = scmp.eq.s32.totalorder %s9, 1
    %p83 = scmp.ne.s32.totalorder %s78, %s80
    %p84 = scmp.eq.s32.totalorder %s9, 0
    %p85 = por %p83, %p84
    %p86 = scmp.ne.s32.totalorder %s78, %s80
    %p87 = scmp.eq.s32.totalorder %s14, 1
    %p88 = por %p86, %p87
    %p89 = scmp.ne.s32.totalorder %s80, %s81
    %p90 = scmp.eq.s32.totalorder %s14, 0
    %p91 = por %p89, %p90
    %p92 = scmp.ne.s32.totalorder %s80, %s81
    %p93 = scmp.eq.s32.totalorder %s15, 1
    %p94 = por %p92, %p93
    %p96 = scmp.ne.s32.totalorder %s81, %s95
    %p97 = scmp.eq.s32.totalorder %s15, 0
    %p98 = por %p96, %p97
    %s99 = ssub.s32 %s16, %s28
    %s100 = ssub.s32 %s17, %s24
    %s101 = sor.u32 %s99, %s100
    %p102 = scmp.eq.s32.totalorder %s101, 0
    %s104 = sadd.s32 %s103, 1
    %s105 = scalar_select %p102, %s103, %s104
    %p108 = pneg %p102
    %p109 = scmp.eq.s32.totalorder %s9, 1
    %p110 = por %p108, %p109
    %p111 = scmp.ne.s32.totalorder %s103, %s106
    %p112 = scmp.eq.s32.totalorder %s9, 0
    %p113 = por %p111, %p112
    %p114 = scmp.ne.s32.totalorder %s103, %s106
    %p115 = scmp.eq.s32.totalorder %s14, 1
    %p116 = por %p114, %p115
    %p117 = scmp.ne.s32.totalorder %s106, %s107
    %p118 = scmp.eq.s32.totalorder %s14, 0
    %p119 = por %p117, %p118
    %p120 = scmp.ne.s32.totalorder %s106, %s107
    %p121 = scmp.eq.s32.totalorder %s15, 1
    %p122 = por %p120, %p121
    %p124 = scmp.ne.s32.totalorder %s107, %s123
    %p125 = scmp.eq.s32.totalorder %s15, 0
    %p126 = por %p124, %p125
    %p127 = scmp.le.s32.totalorder 1, %s9
    %p128 = scmp.lt.s32.totalorder %s9, 3
    %p129 = pnand %p127, %p128
    %p130 = pneg %p129
    // Predicated region
    $region9: #{patch_merging_forward.1} parent=5 // pred_check
      _
    $region10: #{patch_merging_forward.1} parent=5 // pred_check_branch
      %132 = sbr.rel (%p129) target = $region12
    $region11: #{patch_merging_forward.1} parent=5 // pred_region
      %s133 = ssub.s32 %s9, 1
      // Predicated region
      $region13: #{patch_merging_forward.1} parent=11 // pred_check
        %p134 = pneg %p70
      $region14: #{patch_merging_forward.1} parent=11 // pred_check_branch
        %136 = sbr.rel (%p134) target = $region16
      $region15: #{patch_merging_forward.1} parent=11 // pred_region
        _
      $region16: #{patch_merging_forward.1} parent=11 // pred_fallthru
        _
      // Predicated region
      $region17: #{patch_merging_forward.1} parent=11 // pred_check
        %p137 = pneg %p91
      $region18: #{patch_merging_forward.1} parent=11 // pred_check_branch
        %139 = sbr.rel (%p137) target = $region20
      $region19: #{patch_merging_forward.1} parent=11 // pred_region
        _
      $region20: #{patch_merging_forward.1} parent=11 // pred_fallthru
        _
    $region12: #{patch_merging_forward.1} parent=5 // pred_fallthru
      _
    %p140 = scmp.lt.s32.totalorder %s9, 2
    // Predicated region
    $region21: #{patch_merging_forward.1} parent=5 // pred_check
      %p141 = pneg %p140
    $region22: #{patch_merging_forward.1} parent=5 // pred_check_branch
      %143 = sbr.rel (%p141) target = $region24
    $region23: #{patch_merging_forward.1} parent=5 // pred_region
      // Predicated region
      $region25: #{patch_merging_forward.1} parent=23 // pred_check
        %p144 = pneg %p43
      $region26: #{patch_merging_forward.1} parent=23 // pred_check_branch
        %146 = sbr.rel (%p144) target = $region28
      $region27: #{patch_merging_forward.1} parent=23 // pred_region
        %p147 = scmp.lt.s32.totalorder %s16, 1
        %s148 = scalar_select %p147, %s16, 1
        %p149 = scmp.lt.s32.totalorder %s17, 0
        %s150 = scalar_select %p149, %s17, 0
        %s151 = smul.addr %s148, 4
        %s152 = sadd.s32 %s150, %s151
        %s153 = smul.addr %s152, 8
        %s154 = scalar_lea.vmem %s0, %s153
      $region28: #{patch_merging_forward.1} parent=23 // pred_fallthru
        _
    $region24: #{patch_merging_forward.1} parent=5 // pred_fallthru
      _
    %p155 = scmp.le.s32.totalorder 1, %s9
    %p156 = scmp.lt.s32.totalorder %s9, 3
    %p157 = pnand %p155, %p156
    %p158 = pneg %p157
    // Predicated region
    $region29: #{patch_merging_forward.1} parent=5 // pred_check
      _
    $region30: #{patch_merging_forward.1} parent=5 // pred_check_branch
      %160 = sbr.rel (%p157) target = $region32
    $region31: #{patch_merging_forward.1} parent=5 // pred_region
      %s161 = ssub.s32 %s9, 1
      %p162 = scmp.lt.s32.totalorder %s18, 1
      %s163 = scalar_select %p162, %s18, 1
      %p164 = scmp.lt.s32.totalorder %s19, 0
      %s165 = scalar_select %p164, %s19, 0
      %s166 = smul.addr %s163, 4
      %s167 = sadd.s32 %s165, %s166
      %s168 = smul.addr %s167, 8
      %s169 = scalar_lea.vmem %s0, %s168
      %p170 = pneg %p49
      %p171 = pneg %p46
      %p172 = pneg %p70
      %p173 = pneg %p67
      %p174 = pneg %p91
      %p175 = pneg %p88
      %p176 = pneg %p119
      %p177 = pneg %p116
      %p178 = scmp.lt.s32.totalorder %s18, 1
      %s179 = scalar_select %p178, %s18, 1
      %p180 = scmp.lt.s32.totalorder %s19, 0
      %s181 = scalar_select %p180, %s19, 0
      %s182 = sadd.s32 %s181, %s179
      %s183 = smul.addr %s182, 8
      %s184 = scalar_lea.vmem %s3, %s183
      %p185 = scmp.lt.s32.totalorder %s18, 1
      %s186 = scalar_select %p185, %s18, 1
      %p187 = scmp.lt.s32.totalorder %s19, 0
      %s188 = scalar_select %p187, %s19, 0
      %s189 = smul.addr %s186, 4
      %s190 = sadd.s32 %s188, %s189
      %s191 = smul.addr %s190, 8
      %s192 = scalar_lea.vmem %s0, %s191
      %p193 = scmp.lt.s32.totalorder %s18, 1
      %s194 = scalar_select %p193, %s18, 1
      %p195 = scmp.lt.s32.totalorder %s19, 0
      %s196 = scalar_select %p195, %s19, 0
      %s197 = sadd.s32 %s196, %s194
      %s198 = smul.addr %s197, 8
      %s199 = scalar_lea.vmem %s3, %s198
      %v200 = vld [vmem:[%s192] sm:$0xff]
      %v201 = vld [vmem:[%s192 + $0x8] sm:$0xff]
      %v202 = vld [vmem:[%s192 + $0x10] sm:$0xff]
      %v203 = vld [vmem:[%s192 + $0x18] sm:$0xff]
      %vm204 = vcmask 523264
      %v205 = vsel %vm204, %v200, 0.0
      %v206 = vsel %vm204, %v201, 0.0
      %v207 = vadd.f32 %v205, %v206
      %v208 = vsel %vm204, %v202, 0.0
      %v209 = vadd.f32 %v207, %v208
      %v210 = vsel %vm204, %v203, 0.0
      %v211 = vadd.f32 %v209, %v210
      %v212 = vrot.slane %v211, 4
      %v213 = vadd.f32 %v211, %v212
      %v214 = vrot.slane %v213, 2
      %v215 = vadd.f32 %v213, %v214
      %v216 = vrot.slane %v215, 1
      %v217 = vadd.f32 %v215, %v216
      %v218 = vrcp.pop 32.0
      %v219 = vmul.f32 %v217, %v218
      %v220 = vsub.f32 %v200, %v219
      %v221 = vsub.f32 %v201, %v219
      %v222 = vsub.f32 %v202, %v219
      %v223 = vsub.f32 %v203, %v219
      %v224 = vmul.f32 %v220, %v220
      %v225 = vmul.f32 %v221, %v221
      %v226 = vmul.f32 %v222, %v222
      %v227 = vmul.f32 %v223, %v223
      %v228 = vsel %vm204, %v224, 0.0
      %v229 = vsel %vm204, %v225, 0.0
      %v230 = vadd.f32 %v228, %v229
      %v231 = vsel %vm204, %v226, 0.0
      %v232 = vadd.f32 %v230, %v231
      %v233 = vsel %vm204, %v227, 0.0
      %v234 = vadd.f32 %v232, %v233
      %v235 = vrot.slane %v234, 4
      %v236 = vadd.f32 %v234, %v235
      %v237 = vrot.slane %v236, 2
      %v238 = vadd.f32 %v236, %v237
      %v239 = vrot.slane %v238, 1
      %v240 = vadd.f32 %v238, %v239
      %v241 = vmul.f32 %v240, %v218
      %v242 = vadd.f32 %v241, 1e-05
      %v243 = vrsqrt.pop %v242
      %v244 = vmul.f32 %v220, %v243
      %v245 = vmul.f32 %v221, %v243
      %v246 = vmul.f32 %v222, %v243
      %v247 = vmul.f32 %v223, %v243
      %v248 = vld [vmem:[%s1] sm:$0xff]
      %v249 = vld [vmem:[%s2] sm:$0xff]
      %251 = vset.pattern.permute.xlu0 0
      %252 = vperm.xlu0 %251, %v249
      %v253 = vpop.permute.xlu0 %252
      %vm255 = vcmask 261120
      %v257 = vsel %vm255, %v248, 0
      %259 = vmatprep.subr.mxu0 0.0
      %260 = vmatpush1.msra.mxu0 %v244
      %261 = vmatprep.subr.mxu0 0.0
      %262 = vmatpush1.msra.mxu0 %v245
      %263 = vmatprep.subr.mxu0 0.0
      %264 = vmatpush1.msra.mxu0 %v246
      %265 = vmatprep.subr.mxu0 0.0
      %266 = vmatpush1.msra.mxu0 %v247
      %267 = vmatprep.subr.mxu0 0.0
      %268 = vmatpush1.msra.mxu0 0.0
      %269 = vmatprep.subr.mxu0 0.0
      %270 = vmatpush1.msra.mxu0 0.0
      %271 = vmatprep.subr.mxu0 0.0
      %272 = vmatpush1.msra.mxu0 0.0
      %273 = vmatprep.subr.mxu0 0.0
      %274 = vmatpush1.msra.mxu0 0.0
      %275 = vmatprep.subr.mxu0 0.0
      %276 = vmatpush1.msra.mxu0 0.0
      %277 = vmatprep.subr.mxu0 0.0
      %278 = vmatpush1.msra.mxu0 0.0
      %279 = vmatprep.subr.mxu0 0.0
      %280 = vmatpush1.msra.mxu0 0.0
      %281 = vmatprep.subr.mxu0 0.0
      %282 = vmatpush1.msra.mxu0 0.0
      %283 = vmatprep.subr.mxu0 0.0
      %284 = vmatpush1.msra.mxu0 0.0
      %285 = vmatprep.subr.mxu0 0.0
      %286 = vmatpush1.msra.mxu0 0.0
      %287 = vmatprep.subr.mxu0 0.0
      %288 = vmatpush1.msra.mxu0 0.0
      %289 = vmatprep.subr.mxu0 0.0
      %290 = vmatpush1.msra.mxu0 0.0
      %291 = vmatprep.subr.mxu0 0.0
      %292 = vmatpush1.msra.mxu0 0.0
      %293 = vmatprep.subr.mxu0 0.0
      %294 = vmatpush1.msra.mxu0 0.0
      %295 = vmatprep.subr.mxu0 0.0
      %296 = vmatpush1.msra.mxu0 0.0
      %297 = vmatprep.subr.mxu0 0.0
      %298 = vmatpush1.msra.mxu0 0.0
      %299 = vmatprep.subr.mxu0 0.0
      %300 = vmatpush1.msra.mxu0 0.0
      %301 = vmatprep.subr.mxu0 0.0
      %302 = vmatpush1.msra.mxu0 0.0
      %303 = vmatprep.subr.mxu0 0.0
      %304 = vmatpush1.msra.mxu0 0.0
      %305 = vmatprep.subr.mxu0 0.0
      %306 = vmatpush1.msra.mxu0 0.0
      %307 = vmatprep.subr.mxu0 0.0
      %308 = vmatpush1.msra.mxu0 0.0
      %309 = vmatprep.subr.mxu0 0.0
      %310 = vmatpush1.msra.mxu0 0.0
      %311 = vmatprep.subr.mxu0 0.0
      %312 = vmatpush1.msra.mxu0 0.0
      %313 = vmatprep.subr.mxu0 0.0
      %314 = vmatpush1.msra.mxu0 0.0
      %315 = vmatprep.subr.mxu0 0.0
      %316 = vmatpush1.msra.mxu0 0.0
      %317 = vmatprep.subr.mxu0 0.0
      %318 = vmatpush1.msra.mxu0 0.0
      %319 = vmatprep.subr.mxu0 0.0
      %320 = vmatpush1.msra.mxu0 0.0
      %321 = vmatprep.subr.mxu0 0.0
      %322 = vmatpush1.msra.mxu0 0.0
      %323 = vmatprep.mubr.f32.mxu0 0.0
      %324 = vmatmul.mubr.f32.gmra.mrb[0].mxu0 %v257
      %v325 = vpop.f32.mrb[0].mxu0
      %v326 = vadd.f32 %v253, %v325
      %v327 = vpop.f32.mrb[0].mxu0
      %328 = vdwg.mxu0
      %329 = vst.msk [vmem:[%s199] sm:$0xff] %vm204, %v326
      %p330 = scmp.lt.s32.totalorder %s18, 1
      %s331 = scalar_select %p330, %s18, 1
      %p332 = scmp.lt.s32.totalorder %s19, 0
      %s333 = scalar_select %p332, %s19, 0
      %s334 = sadd.s32 %s333, %s331
      %s335 = smul.addr %s334, 8
      %s336 = scalar_lea.vmem %s3, %s335
      // Predicated region
      $region33: #{patch_merging_forward.1} parent=31 // pred_check
        %p337 = pneg %p116
      $region34: #{patch_merging_forward.1} parent=31 // pred_check_branch
        %339 = sbr.rel (%p337) target = $region36
      $region35: #{patch_merging_forward.1} parent=31 // pred_region
        _
      $region36: #{patch_merging_forward.1} parent=31 // pred_fallthru
        _
    $region32: #{patch_merging_forward.1} parent=5 // pred_fallthru
      _
    %p340 = scmp.le.s32.totalorder 2, %s9
    // Predicated region
    $region37: #{patch_merging_forward.1} parent=5 // pred_check
      %p341 = pneg %p340
    $region38: #{patch_merging_forward.1} parent=5 // pred_check_branch
      %343 = sbr.rel (%p341) target = $region40
    $region39: #{patch_merging_forward.1} parent=5 // pred_region
      %s344 = ssub.s32 %s9, 2
      // Predicated region
      $region41: #{patch_merging_forward.1} parent=39 // pred_check
        %p345 = pneg %p122
      $region42: #{patch_merging_forward.1} parent=39 // pred_check_branch
        %347 = sbr.rel (%p345) target = $region44
      $region43: #{patch_merging_forward.1} parent=39 // pred_region
        %p348 = scmp.lt.s32.totalorder %s20, 1
        %s349 = scalar_select %p348, %s20, 1
        %p350 = scmp.lt.s32.totalorder %s21, 0
        %s351 = scalar_select %p350, %s21, 0
        %s352 = sadd.s32 %s351, %s349
        %s353 = smul.addr %s352, 8
        %s354 = scalar_lea.vmem %s3, %s353
      $region44: #{patch_merging_forward.1} parent=39 // pred_fallthru
        _
    $region40: #{patch_merging_forward.1} parent=5 // pred_fallthru
      _
  $region6: #{patch_merging_forward.1} parent=0 // loop_footer
    %s13 = sadd.s32 1, %s9
  $region7: #{patch_merging_forward.1} parent=0 // loop_footer_branch
    %8 = sbr.rel target = $region3
  $region8: #{patch_merging_forward.1} parent=0 // loop_exit
    _

</llo_original>
